<compile_context>
chip_gen: v7x
topology: tpu7x:2x2x1
jax: 0.10.0
libtpu: 0.0.40
codegen_flags: <defaults>
</compile_context>

<pallas_src>
import functools

import jax
import jax.numpy as jnp
from jax import lax
from jax.experimental import pallas as pl
from jax.experimental.pallas import tpu as pltpu


# ----------------------------------------------------------------------------
# VMEM budget / tiling helpers
# ----------------------------------------------------------------------------
def _tpu_vmem_capacity():
    try:
        return int(pltpu.get_tpu_info().vmem_capacity_bytes)
    except Exception:
        return 128 << 20  # v5e/v6e default


_VMEM_CAP = _tpu_vmem_capacity()
# Scoped VMEM limit we request from Mosaic (leave headroom for compiler scratch).
_VMEM_LIMIT = max(32 << 20, min(int(_VMEM_CAP * 0.75), 64 << 20))
# Per-block budget: in x2 buffers + out x2 buffers + f32 working copies ~= 6x block.
_BLOCK_BUDGET = min(_VMEM_LIMIT // 6, 8 << 20)


def _params(*sem):
    return pltpu.CompilerParams(dimension_semantics=sem,
                                vmem_limit_bytes=_VMEM_LIMIT)


def _f32(v):
    """Cast to f32 only if needed (avoid redundant whole-array astype copies)."""
    return v if v.dtype == jnp.float32 else v.astype(jnp.float32)


def _row_tile(nrows, row_bytes, budget, min_steps=4):
    """Row-block size: multiple of 8 (or all rows), divides nrows, block<=budget.

    Prefers leaving >= min_steps grid steps (for DMA/compute overlap and the
    second TensorCore on v7x) as long as blocks stay >= ~1 MiB.
    """
    if nrows % 8 != 0:
        return nrows  # (8,128) layout rule: second-minor block dim must be %8 or full
    cands = [r for r in range(8, nrows + 1, 8) if nrows % r == 0]
    fits = [r for r in cands if r * row_bytes <= budget] or [8]
    pipelined = [r for r in fits
                 if nrows // r >= min_steps and r * row_bytes >= (1 << 20)]
    return max(pipelined) if pipelined else max(fits)


def _divisor_tile(n, unit, per_unit_bytes, budget):
    """Largest divisor of n that is a multiple of `unit` and fits the budget."""
    if n % unit != 0:
        return n
    cands = [d for d in range(unit, n + 1, unit)
             if n % d == 0 and d * per_unit_bytes <= budget]
    return max(cands) if cands else unit


def _col_tile(n, per_row_budget_bytes):
    """Largest multiple-of-128 divisor of n whose f32 row slab fits the budget."""
    if n % 128 != 0:
        return n
    cands = [d for d in range(128, n + 1, 128)
             if n % d == 0 and d * 4 <= per_row_budget_bytes]
    return max(cands) if cands else n


# ----------------------------------------------------------------------------
# kernels
# ----------------------------------------------------------------------------
def _row_inorm_kernel(inv_n, eps, x_ref, g_ref, b_ref, y_ref):
    # x: (tr, HW) row-packed instances; g/b: (tr, 1) per-instance affine.
    # Fused single-traversal statistics (sum and sumsq together), clamped var.
    x = _f32(x_ref[...])
    mean = jnp.sum(x, axis=1, keepdims=True) * inv_n
    msq = jnp.sum(x * x, axis=1, keepdims=True) * inv_n
    var = jnp.maximum(msq - mean * mean, 0.0)            # biased, clamp cancellation
    rstd = lax.rsqrt(var + eps)
    scale = rstd * _f32(g_ref[...])
    shift = _f32(b_ref[...]) - mean * scale
    y_ref[...] = (x * scale + shift).astype(y_ref.dtype)


def _lnorm_single_kernel(n, eps, x_ref, g_ref, b_ref, y_ref):
    # x: (tr, N); per-row mean / *unbiased* std; g/b: (1, N) per-column affine.
    x = _f32(x_ref[...])
    mean = jnp.sum(x, axis=1, keepdims=True) / n
    xc = x - mean
    std = jnp.sqrt(jnp.sum(xc * xc, axis=1, keepdims=True) / max(n - 1.0, 1.0))
    inv = 1.0 / (std + eps)       # exact divide (matches torch; approx hurts accuracy)
    y_ref[...] = (xc * (inv * _f32(g_ref[...])) + _f32(b_ref[...])).astype(y_ref.dtype)


def _row_stats_kernel(x_ref, s_ref, sq_ref):
    # Per-row sum / sumsq accumulated across the (arbitrary) column-tile axis.
    @pl.when(pl.program_id(1) == 0)
    def _():
        s_ref[...] = jnp.zeros_like(s_ref)
        sq_ref[...] = jnp.zeros_like(sq_ref)

    x = _f32(x_ref[...])                                   # (tr, tn)
    s_ref[...] += jnp.sum(x, axis=1, keepdims=True)
    sq_ref[...] += jnp.sum(x * x, axis=1, keepdims=True)


def _row_apply_kernel(x_ref, mean_ref, inv_ref, g_ref, b_ref, y_ref):
    # y = (x - mean_row) * inv_row * g_col + b_col
    x = _f32(x_ref[...])
    scale = inv_ref[...] * _f32(g_ref[...])
    y_ref[...] = ((x - mean_ref[...]) * scale + _f32(b_ref[...])).astype(y_ref.dtype)


def _bn_fused_kernel(inv_n, eps, x_ref, g_ref, b_ref, y_ref):
    # Single-pass BatchNorm: whole (B, C, HW) tensor in one block.
    x = _f32(x_ref[...])
    mean = jnp.sum(x, axis=(0, 2), keepdims=True) * inv_n   # (1, C, 1)
    msq = jnp.sum(x * x, axis=(0, 2), keepdims=True) * inv_n
    var = jnp.maximum(msq - mean * mean, 0.0)
    rstd = lax.rsqrt(var + eps)
    scale = rstd * _f32(g_ref[...])
    shift = _f32(b_ref[...]) - mean * scale
    y_ref[...] = (x * scale + shift).astype(y_ref.dtype)


def _bn_stats_kernel(x_ref, s_ref, sq_ref):
    # Per-channel sum / sumsq; channel tiles parallel (axis 0), batch tiles
    # accumulate (axis 1, arbitrary) into output-resident (1, tc, 1) blocks.
    @pl.when(pl.program_id(1) == 0)
    def _():
        s_ref[...] = jnp.zeros_like(s_ref)
        sq_ref[...] = jnp.zeros_like(sq_ref)

    x = _f32(x_ref[...])                                    # (tb, tc, HW)
    s_ref[...] += jnp.sum(x, axis=(0, 2), keepdims=True)
    sq_ref[...] += jnp.sum(x * x, axis=(0, 2), keepdims=True)


def _scale_shift_kernel(x_ref, scale_ref, shift_ref, y_ref):
    # One fused multiply-add pass: per-channel scale/shift precomputed outside.
    y_ref[...] = (_f32(x_ref[...]) * scale_ref[...] + shift_ref[...]).astype(y_ref.dtype)


# ----------------------------------------------------------------------------
# pallas_call wrappers
# ----------------------------------------------------------------------------
def _instance_norm(x, gamma, beta, eps, per_instance_affine, block_budget=None):
    budget = block_budget or _BLOCK_BUDGET
    B, C, H, W = x.shape
    HW = H * W
    R = B * C
    x2 = x.reshape(R, HW)

    if per_instance_affine:      # adain: one (weight, bias) per (b, c) instance
        g = _f32(jnp.asarray(gamma)).reshape(R, 1)
        b = _f32(jnp.asarray(beta)).reshape(R, 1)
    else:                        # inorm: per-channel affine broadcast over batch
        g = jnp.broadcast_to(_f32(gamma).reshape(1, C), (B, C)).reshape(R, 1)
        b = jnp.broadcast_to(_f32(beta).reshape(1, C), (B, C)).reshape(R, 1)

    # TODO(synk): spatial (HW) two-pass tiling for extreme feature maps where a
    # single 8-row slab exceeds the block budget; not needed for typical shapes.
    tr = _row_tile(R, HW * 4, budget)
    y = pl.pallas_call(
        functools.partial(_row_inorm_kernel, 1.0 / HW, float(eps)),
        out_shape=jax.ShapeDtypeStruct((R, HW), x.dtype),
        grid=(R // tr,),
        in_specs=[pl.BlockSpec((tr, HW), lambda i: (i, 0)),
                  pl.BlockSpec((tr, 1), lambda i: (i, 0)),
                  pl.BlockSpec((tr, 1), lambda i: (i, 0))],
        out_specs=pl.BlockSpec((tr, HW), lambda i: (i, 0)),
        compiler_params=_params("parallel"),
    )(x2, g, b)
    return y.reshape(B, C, H, W)


def _layer_norm(x, gamma, beta, eps, block_budget=None):
    budget = block_budget or _BLOCK_BUDGET
    B, C, H, W = x.shape
    HW = H * W
    N = C * HW
    n = float(N)
    x2 = x.reshape(B, N)
    g_col = jnp.broadcast_to(_f32(gamma)[:, None], (C, HW)).reshape(1, N)
    b_col = jnp.broadcast_to(_f32(beta)[:, None], (C, HW)).reshape(1, N)

    min_rows = 8 if B % 8 == 0 else B
    tn = _col_tile(N, budget // max(min_rows, 1))

    if min_rows * N * 4 <= budget or tn == N:
        # single pass: full feature axis per block, rows tiled & pipelined.
        tr = _row_tile(B, N * 4, budget)
        y = pl.pallas_call(
            functools.partial(_lnorm_single_kernel, n, float(eps)),
            out_shape=jax.ShapeDtypeStruct((B, N), x.dtype),
            grid=(B // tr,),
            in_specs=[pl.BlockSpec((tr, N), lambda i: (i, 0)),
                      pl.BlockSpec((1, N), lambda i: (0, 0)),
                      pl.BlockSpec((1, N), lambda i: (0, 0))],
            out_specs=pl.BlockSpec((tr, N), lambda i: (i, 0)),
            compiler_params=_params("parallel"),
        )(x2, g_col, b_col)
        return y.reshape(B, C, H, W)

    # two-pass: feature-tiled sum/sumsq accumulation, hoisted per-sample
    # mean/inv (plain JAX, O(B)), then a feature-tiled apply pass.
    tr = _row_tile(B, tn * 4, budget)
    sums, sqs = pl.pallas_call(
        _row_stats_kernel,
        out_shape=(jax.ShapeDtypeStruct((B, 1), jnp.float32),
                   jax.ShapeDtypeStruct((B, 1), jnp.float32)),
        grid=(B // tr, N // tn),
        in_specs=[pl.BlockSpec((tr, tn), lambda i, j: (i, j))],
        out_specs=(pl.BlockSpec((tr, 1), lambda i, j: (i, 0)),
                   pl.BlockSpec((tr, 1), lambda i, j: (i, 0))),
        compiler_params=_params("parallel", "arbitrary"),
    )(x2)

    mean = sums / n
    centered_ss = jnp.maximum(sqs - n * mean * mean, 0.0)   # sum((x-mean)^2)
    std = jnp.sqrt(centered_ss / max(n - 1.0, 1.0))         # torch .std(): unbiased
    inv = 1.0 / (std + eps)

    y = pl.pallas_call(
        _row_apply_kernel,
        out_shape=jax.ShapeDtypeStruct((B, N), x.dtype),
        grid=(B // tr, N // tn),
        in_specs=[pl.BlockSpec((tr, tn), lambda i, j: (i, j)),
                  pl.BlockSpec((tr, 1), lambda i, j: (i, 0)),
                  pl.BlockSpec((tr, 1), lambda i, j: (i, 0)),
                  pl.BlockSpec((1, tn), lambda i, j: (0, j)),
                  pl.BlockSpec((1, tn), lambda i, j: (0, j))],
        out_specs=pl.BlockSpec((tr, tn), lambda i, j: (i, j)),
        compiler_params=_params("parallel", "parallel"),
    )(x2, mean, inv, g_col, b_col)
    return y.reshape(B, C, H, W)


def _batch_norm(x, gamma, beta, eps, block_budget=None):
    budget = block_budget or _BLOCK_BUDGET
    B, C, H, W = x.shape
    HW = H * W
    n = float(B * HW)
    x3 = x.reshape(B, C, HW)
    g = _f32(gamma).reshape(1, C, 1)
    b = _f32(beta).reshape(1, C, 1)

    if B * C * HW * 4 <= budget:
        # fused single pass: 1 read + 1 write of x (vs 2 reads + 1 write).
        y = pl.pallas_call(
            functools.partial(_bn_fused_kernel, 1.0 / n, float(eps)),
            out_shape=jax.ShapeDtypeStruct((B, C, HW), x.dtype),
            grid=(1,),
            in_specs=[pl.BlockSpec((B, C, HW), lambda i: (0, 0, 0)),
                      pl.BlockSpec((1, C, 1), lambda i: (0, 0, 0)),
                      pl.BlockSpec((1, C, 1), lambda i: (0, 0, 0))],
            out_specs=pl.BlockSpec((B, C, HW), lambda i: (0, 0, 0)),
            compiler_params=_params("arbitrary"),
        )(x3, g, b)
        return y.reshape(B, C, H, W)

    # Two-pass path: channel-tiled stats (parallel over channel tiles, batch
    # axis accumulates), hoisted per-channel scale/shift, tiled apply pass.
    # TODO(synk): spatial (HW) tiling when a single (1, 8, HW) slab still
    # exceeds the block budget.
    tc = _divisor_tile(C, 8, HW * 4, budget)
    tb = _divisor_tile(B, 1, tc * HW * 4, budget)

    sums, sqs = pl.pallas_call(
        _bn_stats_kernel,
        out_shape=(jax.ShapeDtypeStruct((1, C, 1), jnp.float32),
                   jax.ShapeDtypeStruct((1, C, 1), jnp.float32)),
        grid=(C // tc, B // tb),
        in_specs=[pl.BlockSpec((tb, tc, HW), lambda ci, bi: (bi, ci, 0))],
        out_specs=(pl.BlockSpec((1, tc, 1), lambda ci, bi: (0, ci, 0)),
                   pl.BlockSpec((1, tc, 1), lambda ci, bi: (0, ci, 0))),
        compiler_params=_params("parallel", "arbitrary"),
    )(x3)

    # Hoisted per-channel math (tiny, plain JAX): variance clamped at 0.
    mean = sums / n
    var = jnp.maximum(sqs / n - mean * mean, 0.0)
    rstd = lax.rsqrt(var + eps)
    scale = rstd * g
    shift = b - mean * scale

    y = pl.pallas_call(
        _scale_shift_kernel,
        out_shape=jax.ShapeDtypeStruct((B, C, HW), x.dtype),
        grid=(B // tb, C // tc),
        in_specs=[pl.BlockSpec((tb, tc, HW), lambda bi, ci: (bi, ci, 0)),
                  pl.BlockSpec((1, tc, 1), lambda bi, ci: (0, ci, 0)),
                  pl.BlockSpec((1, tc, 1), lambda bi, ci: (0, ci, 0))],
        out_specs=pl.BlockSpec((tb, tc, HW), lambda bi, ci: (bi, ci, 0)),
        compiler_params=_params("parallel", "parallel"),
    )(x3, scale, shift)
    return y.reshape(B, C, H, W)


# ----------------------------------------------------------------------------
# Norm2d module (JAX/Pallas mirror of the PyTorch class)
# ----------------------------------------------------------------------------
class Norm2d:
    def __init__(self, nch, norm_mode, affine=None, eps=1e-5, key=None):
        self.nch = nch
        self.norm_mode = norm_mode
        self.eps = eps
        self.affine = bool(affine)
        # AdaIN-style externally assigned per-(b*c) affine:
        self.weight = None
        self.bias = None

        if norm_mode == 'lnorm' and self.affine:
            key = key if key is not None else jax.random.PRNGKey(0)
            self.gamma = jax.random.uniform(key, (nch,), jnp.float32)  # .uniform_()
            self.beta = jnp.zeros((nch,), jnp.float32)
        elif norm_mode in ('bnorm', 'inorm') and self.affine:
            self.gamma = jnp.ones((nch,), jnp.float32)   # PyTorch init: w=1, b=0
            self.beta = jnp.zeros((nch,), jnp.float32)
        else:
            self.gamma = None
            self.beta = None

    def __call__(self, x):
        mode = self.norm_mode
        if mode == 'none' or mode is None:
            return None  # faithful: PyTorch forward returns None when norm is None
        C = self.nch
        gamma = self.gamma if self.gamma is not None else jnp.ones((C,), jnp.float32)
        beta = self.beta if self.beta is not None else jnp.zeros((C,), jnp.float32)
        if mode == 'bnorm':
            return _batch_norm(x, gamma, beta, self.eps)
        if mode == 'inorm':
            return _instance_norm(x, gamma, beta, self.eps, per_instance_affine=False)
        if mode == 'lnorm':
            return _layer_norm(x, gamma, beta, self.eps)
        if mode == 'adain':
            assert self.weight is not None and self.bias is not None, \
                'Please assign weight and bias before calling AdaIN!'
            return _instance_norm(x, self.weight, self.bias, self.eps,
                                  per_instance_affine=True)
        raise ValueError(f'unknown norm_mode: {mode}')


# ----------------------------------------------------------------------------
# pure-JAX references (mirror PyTorch semantics) + demo
# ----------------------------------------------------------------------------
def _ref_bnorm(x, gamma, beta, eps):
    mean = x.mean(axis=(0, 2, 3), keepdims=True)
    var = x.var(axis=(0, 2, 3), keepdims=True)             # biased
    y = (x - mean) / jnp.sqrt(var + eps)
    return y * gamma.reshape(1, -1, 1, 1) + beta.reshape(1, -1, 1, 1)


def _ref_inorm(x, gamma, beta, eps):
    mean = x.mean(axis=(2, 3), keepdims=True)
    var = x.var(axis=(2, 3), keepdims=True)                 # biased
    y = (x - mean) / jnp.sqrt(var + eps)
    return y * gamma.reshape(1, -1, 1, 1) + beta.reshape(1, -1, 1, 1)


def _ref_adain(x, w, b, eps):
    B, C, _, _ = x.shape
    mean = x.mean(axis=(2, 3), keepdims=True)
    var = x.var(axis=(2, 3), keepdims=True)
    y = (x - mean) / jnp.sqrt(var + eps)
    return y * w.reshape(B, C, 1, 1) + b.reshape(B, C, 1, 1)


def _ref_lnorm(x, gamma, beta, eps, affine):
    B = x.shape[0]
    flat = x.reshape(B, -1)
    mean = flat.mean(axis=1).reshape(B, 1, 1, 1)
    std = flat.std(axis=1, ddof=1).reshape(B, 1, 1, 1)      # torch .std() = unbiased
    y = (x - mean) / (std + eps)
    if affine:
        y = y * gamma.reshape(1, -1, 1, 1) + beta.reshape(1, -1, 1, 1)
    return y


if __name__ == "__main__":
    key = jax.random.PRNGKey(0)
    kx, kw, kb, kg, kx2, kg2, kb2, kx3 = jax.random.split(key, 8)

    B, C, H, W = 2, 4, 16, 16
    x = jax.random.normal(kx, (B, C, H, W), jnp.float32)
    eps = 1e-5

    # --- bnorm (affine=True), fused single-pass path -------------------------
    m = Norm2d(C, 'bnorm', affine=True)
    y = m(x)
    jax.block_until_ready(y)
    assert jnp.allclose(y, _ref_bnorm(x, m.gamma, m.beta, m.eps), atol=1e-4, rtol=1e-4)

    # --- bnorm two-pass (channel-tiled stats + hoisted scale/shift apply) ----
    Bb, Cb = 4, 16
    xb = jax.random.normal(kx2, (Bb, Cb, 16, 16), jnp.float32)
    gb = jax.random.uniform(kg2, (Cb,), jnp.float32) + 0.5
    bb = 0.1 * jax.random.normal(kb2, (Cb,), jnp.float32)
    yb = _batch_norm(xb, gb, bb, eps, block_budget=8 << 10)   # force tiling
    jax.block_until_ready(yb)
    assert jnp.allclose(yb, _ref_bnorm(xb, gb, bb, eps), atol=1e-4, rtol=1e-4)

    # --- inorm (affine=None -> no affine, PyTorch default behaviour) ---------
    m = Norm2d(C, 'inorm', affine=None)
    y = m(x)
    jax.block_until_ready(y)
    assert jnp.allclose(y, _ref_inorm(x, jnp.ones((C,)), jnp.zeros((C,)), m.eps),
                        atol=1e-4, rtol=1e-4)

    # --- inorm, row-tiled grid (small block budget forces multiple steps) ----
    Ci = 8
    xi = jax.random.normal(kx3, (2, Ci, 16, 16), jnp.float32)
    yi = _instance_norm(xi, jnp.ones((Ci,)), jnp.zeros((Ci,)), eps,
                        per_instance_affine=False, block_budget=4 << 10)
    jax.block_until_ready(yi)
    assert jnp.allclose(yi, _ref_inorm(xi, jnp.ones((Ci,)), jnp.zeros((Ci,)), eps),
                        atol=1e-4, rtol=1e-4)

    # --- lnorm (affine=True, gamma ~ U[0,1)), single-pass path ---------------
    m = Norm2d(C, 'lnorm', affine=True, key=kg)
    y = m(x)
    jax.block_until_ready(y)
    assert jnp.allclose(y, _ref_lnorm(x, m.gamma, m.beta, m.eps, True),
                        atol=1e-4, rtol=1e-4)

    # --- lnorm two-pass (feature-tiled accumulation) --------------------------
    yl = _layer_norm(x, m.gamma, m.beta, m.eps, block_budget=4 << 10)
    jax.block_until_ready(yl)
    assert jnp.allclose(yl, _ref_lnorm(x, m.gamma, m.beta, m.eps, True),
                        atol=1e-4, rtol=1e-4)

    # --- adain (per-(b*c) weight/bias assigned before forward) ---------------
    m = Norm2d(C, 'adain')
    m.weight = 1.0 + 0.1 * jax.random.normal(kw, (B * C,), jnp.float32)
    m.bias = 0.1 * jax.random.normal(kb, (B * C,), jnp.float32)
    y = m(x)
    jax.block_until_ready(y)
    assert jnp.allclose(y, _ref_adain(x, m.weight, m.bias, m.eps), atol=1e-4, rtol=1e-4)

    # --- none: forward returns None (matches the PyTorch module) -------------
    assert Norm2d(C, 'none')(x) is None

    print("KERNEL_OK")
</pallas_src>

<mosaic_0001>
module attributes {stable_mosaic.version = 11 : i64} {
  func.func @_bn_fused_kernel(%arg0: i32, %arg1: memref<2x4x256xf32, #tpu.memory_space<vmem>>, %arg2: memref<1x4x1xf32, #tpu.memory_space<vmem>>, %arg3: memref<1x4x1xf32, #tpu.memory_space<vmem>>, %arg4: memref<2x4x256xf32, #tpu.memory_space<vmem>>) attributes {dimension_semantics = [#tpu.dimension_semantics<arbitrary>], iteration_bounds = array<i64: 1>, scalar_prefetch = 0 : i64, scratch_operands = 0 : i64, tpu.core_type = #tpu.core_type<tc>, window_params = [{pipeline_mode = #tpu.pipeline_mode<synchronous>, transform_indices = @transform_0, window_bounds = array<i64: 2, 4, 256>}, {pipeline_mode = #tpu.pipeline_mode<synchronous>, transform_indices = @transform_1, window_bounds = array<i64: 1, 4, 1>}, {pipeline_mode = #tpu.pipeline_mode<synchronous>, transform_indices = @transform_2, window_bounds = array<i64: 1, 4, 1>}, {pipeline_mode = #tpu.pipeline_mode<synchronous>, transform_indices = @transform_3, window_bounds = array<i64: 2, 4, 256>}]} {
    %c0 = arith.constant 0 : index
    %c0_0 = arith.constant 0 : index
    %c0_1 = arith.constant 0 : index
    %0 = vector.load %arg1[%c0, %c0_0, %c0_1] : memref<2x4x256xf32, #tpu.memory_space<vmem>>, vector<2x4x256xf32>
    %cst = arith.constant dense<0.000000e+00> : vector<4xf32>
    %1 = vector.multi_reduction <add>, %0, %cst [0, 2] : vector<2x4x256xf32> to vector<4xf32>
    %2 = vector.shape_cast %1 : vector<4xf32> to vector<1x4x1xf32>
    %cst_2 = arith.constant 0.001953125 : f32
    %3 = vector.broadcast %cst_2 : f32 to vector<1x4x1xf32>
    %4 = arith.mulf %2, %3 : vector<1x4x1xf32>
    %5 = arith.mulf %0, %0 : vector<2x4x256xf32>
    %cst_3 = arith.constant dense<0.000000e+00> : vector<4xf32>
    %6 = vector.multi_reduction <add>, %5, %cst_3 [0, 2] : vector<2x4x256xf32> to vector<4xf32>
    %7 = vector.shape_cast %6 : vector<4xf32> to vector<1x4x1xf32>
    %cst_4 = arith.constant 0.001953125 : f32
    %8 = vector.broadcast %cst_4 : f32 to vector<1x4x1xf32>
    %9 = arith.mulf %7, %8 : vector<1x4x1xf32>
    %10 = arith.mulf %4, %4 : vector<1x4x1xf32>
    %11 = arith.subf %9, %10 : vector<1x4x1xf32>
    %cst_5 = arith.constant 0.000000e+00 : f32
    %12 = vector.broadcast %cst_5 : f32 to vector<1x4x1xf32>
    %13 = arith.maximumf %11, %12 : vector<1x4x1xf32>
    %cst_6 = arith.constant 9.99999974E-6 : f32
    %14 = vector.broadcast %cst_6 : f32 to vector<1x4x1xf32>
    %15 = arith.addf %13, %14 : vector<1x4x1xf32>
    %16 = math.rsqrt %15 : vector<1x4x1xf32>
    %c0_7 = arith.constant 0 : index
    %c0_8 = arith.constant 0 : index
    %c0_9 = arith.constant 0 : index
    %17 = vector.load %arg2[%c0_7, %c0_8, %c0_9] : memref<1x4x1xf32, #tpu.memory_space<vmem>>, vector<1x4x1xf32>
    %18 = arith.mulf %16, %17 : vector<1x4x1xf32>
    %c0_10 = arith.constant 0 : index
    %c0_11 = arith.constant 0 : index
    %c0_12 = arith.constant 0 : index
    %19 = vector.load %arg3[%c0_10, %c0_11, %c0_12] : memref<1x4x1xf32, #tpu.memory_space<vmem>>, vector<1x4x1xf32>
    %20 = arith.mulf %4, %18 : vector<1x4x1xf32>
    %21 = arith.subf %19, %20 : vector<1x4x1xf32>
    %22 = vector.broadcast %18 : vector<1x4x1xf32> to vector<2x4x256xf32>
    %23 = arith.mulf %0, %22 : vector<2x4x256xf32>
    %24 = vector.broadcast %21 : vector<1x4x1xf32> to vector<2x4x256xf32>
    %25 = arith.addf %23, %24 : vector<2x4x256xf32>
    %c0_13 = arith.constant 0 : index
    %c0_14 = arith.constant 0 : index
    %c0_15 = arith.constant 0 : index
    %26 = vector.load %arg4[%c0_13, %c0_14, %c0_15] : memref<2x4x256xf32, #tpu.memory_space<vmem>>, vector<2x4x256xf32>
    tpu.vector_store %arg4[%c0_13, %c0_14, %c0_15], %25 {strides = array<i32>} : memref<2x4x256xf32, #tpu.memory_space<vmem>>, vector<2x4x256xf32>,
    return
  }
  func.func @transform_0(%arg0: i32) -> (i32, i32, i32) {
    %c0_i32 = arith.constant 0 : i32
    %c0_i32_0 = arith.constant 0 : i32
    %c0_i32_1 = arith.constant 0 : i32
    %c0_i32_2 = arith.constant 0 : i32
    return %c0_i32, %c0_i32_0, %c0_i32_1 : i32, i32, i32
  }
  func.func @transform_1(%arg0: i32) -> (i32, i32, i32) {
    %c0_i32 = arith.constant 0 : i32
    %c0_i32_0 = arith.constant 0 : i32
    %c0_i32_1 = arith.constant 0 : i32
    %c0_i32_2 = arith.constant 0 : i32
    return %c0_i32, %c0_i32_0, %c0_i32_1 : i32, i32, i32
  }
  func.func @transform_2(%arg0: i32) -> (i32, i32, i32) {
    %c0_i32 = arith.constant 0 : i32
    %c0_i32_0 = arith.constant 0 : i32
    %c0_i32_1 = arith.constant 0 : i32
    %c0_i32_2 = arith.constant 0 : i32
    return %c0_i32, %c0_i32_0, %c0_i32_1 : i32, i32, i32
  }
  func.func @transform_3(%arg0: i32) -> (i32, i32, i32) {
    %c0_i32 = arith.constant 0 : i32
    %c0_i32_0 = arith.constant 0 : i32
    %c0_i32_1 = arith.constant 0 : i32
    %c0_i32_2 = arith.constant 0 : i32
    return %c0_i32, %c0_i32_0, %c0_i32_1 : i32, i32, i32
  }
}

</mosaic_0001>

<llo_original>
// kernel: tpu_custom_call.1
$region0: #{tpu_custom_call.1}
  #allocation0 [shape = 'u32[]', space=smem, size = 0x4, offset = 0x4, fixed_abs, tag = 'smem constant byte address 0x4 - core index']
  #allocation1 [shape = 'u32[144,128]{1,0:T(1,128)}', space=vmem, size = 0x12000, scoped, tag = 'internal scratch']
  %s0 = inlined_call_operand.hbm [shape: f32[2,4,256], index: 0, kind: input, shape index: {}]
  %s1 = inlined_call_operand.hbm [shape: f32[1,4,1], index: 1, kind: input, shape index: {}]
  %s2 = inlined_call_operand.hbm [shape: f32[1,4,1], index: 2, kind: input, shape index: {}]
  %s3 = inlined_call_operand.hbm [shape: f32[2,4,256], index: 3, kind: output, shape index: {}]
  %s4 = sld [smem:[#allocation0]]
  $region34: #{tpu_custom_call.1} parent=0
    _
  %s6 = ssub.s32 1, %s4
  %s7 = scalar_select 0, %s6, %s4
  $region1: #{tpu_custom_call.1} parent=0
    #allocation2 [shape = 'u8[8192]{0}', space=vmem, size = 0x2000, scoped, tag = 'input window, operand 0, single buffered']
    #allocation3 [shape = 's32[1]{0}', space=sflag, size = 0x4, scoped, tag = 'scoped memory for tpu_custom_call.1']
    #allocation4 [shape = 's32[1]{0}', space=sflag, size = 0x4, scoped, tag = 'scoped memory for tpu_custom_call.1']
    #allocation5 [shape = 'u8[2048]{0}', space=vmem, size = 0x800, scoped, tag = 'input window, operand 1, single buffered']
    #allocation6 [shape = 's32[1]{0}', space=sflag, size = 0x4, scoped, tag = 'scoped memory for tpu_custom_call.1']
    #allocation7 [shape = 'u8[2048]{0}', space=vmem, size = 0x800, scoped, tag = 'input window, operand 2, single buffered']
    #allocation8 [shape = 'u8[8192]{0}', space=vmem, size = 0x2000, scoped, tag = 'output window, operand 0, single buffered']
    %8 = vsyncpa [#allocation3], 0
    %9 = vsyncpa [#allocation6], 0
    %10 = vsyncpa [#allocation4], 0
    // Predicated region
    $region2: #{tpu_custom_call.1} parent=1 // pred_check
      _
    $region3: #{tpu_custom_call.1} parent=1 // pred_check_branch
      %12 = sbr.rel (0) target = $region5
    $region4: #{tpu_custom_call.1} parent=1 // pred_region
      %s14 = ssub.s32 256, 256
      %15 = vsyncadd [#allocation3], %s14
      %s16 = sshll.u32 [#allocation2], 4
      %s17 = int_to_ptr.vmem [resolvable:$true] %s16
      %22 = dma.hbm_to_vmem [thread:$0]  %s0, 256, %s17, [#allocation3], 128, 128, 8
    $region5: #{tpu_custom_call.1} parent=1 // pred_fallthru
      _
    // Predicated region
    $region6: #{tpu_custom_call.1} parent=1 // pred_check
      _
    $region7: #{tpu_custom_call.1} parent=1 // pred_check_branch
      %24 = sbr.rel (0) target = $region9
    $region8: #{tpu_custom_call.1} parent=1 // pred_region
      %s26 = ssub.s32 64, 64
      %27 = vsyncadd [#allocation6], %s26
      %s29 = sshll.u32 [#allocation5], 4
      %s30 = int_to_ptr.vmem [resolvable:$true] %s29
      %32 = dma.hbm_to_vmem [thread:$0]  %s1, 64, %s30, [#allocation6]
    $region9: #{tpu_custom_call.1} parent=1 // pred_fallthru
      _
    // Predicated region
    $region10: #{tpu_custom_call.1} parent=1 // pred_check
      _
    $region11: #{tpu_custom_call.1} parent=1 // pred_check_branch
      %34 = sbr.rel (0) target = $region13
    $region12: #{tpu_custom_call.1} parent=1 // pred_region
      %s36 = ssub.s32 64, 64
      %37 = vsyncadd [#allocation6], %s36
      %s39 = sshll.u32 [#allocation7], 4
      %s40 = int_to_ptr.vmem [resolvable:$true] %s39
      %42 = dma.hbm_to_vmem [thread:$0]  %s2, 64, %s40, [#allocation6]
    $region13: #{tpu_custom_call.1} parent=1 // pred_fallthru
      _
    // Predicated region
    $region14: #{tpu_custom_call.1} parent=1 // pred_check
      _
    $region15: #{tpu_custom_call.1} parent=1 // pred_check_branch
      %44 = sbr.rel (0) target = $region17
    $region16: #{tpu_custom_call.1} parent=1 // pred_region
      %45 = dma.done [#allocation3], 256
    $region17: #{tpu_custom_call.1} parent=1 // pred_fallthru
      _
    // Predicated region
    $region18: #{tpu_custom_call.1} parent=1 // pred_check
      _
    $region19: #{tpu_custom_call.1} parent=1 // pred_check_branch
      %47 = sbr.rel (0) target = $region21
    $region20: #{tpu_custom_call.1} parent=1 // pred_region
      %48 = dma.done [#allocation6], 64
    $region21: #{tpu_custom_call.1} parent=1 // pred_fallthru
      _
    // Predicated region
    $region22: #{tpu_custom_call.1} parent=1 // pred_check
      _
    $region23: #{tpu_custom_call.1} parent=1 // pred_check_branch
      %50 = sbr.rel (0) target = $region25
    $region24: #{tpu_custom_call.1} parent=1 // pred_region
      %51 = dma.done [#allocation6], 64
    $region25: #{tpu_custom_call.1} parent=1 // pred_fallthru
      _
    %v52 = vld [vmem:[#allocation2] sm:$0xff]
    %v53 = vld [vmem:[#allocation2 + $0x8] sm:$0xff]
    %v56 = vcombine.high %v52, %v52
    %v57 = vcombine.high %v53, %v53
    %vm60 = vcmask 1043456
    %v61 = vsel %vm60, %v52, 0.0
    %v62 = vsel %vm60, %v56, 0.0
    %v63 = vadd.f32 %v61, %v62
    %v64 = vsel %vm60, %v53, 0.0
    %v65 = vadd.f32 %v63, %v64
    %v66 = vsel %vm60, %v57, 0.0
    %v67 = vadd.f32 %v65, %v66
    %68 = vadd.xlane.f32.xlu0 %v67
    %v69 = vpop.xlane.xlu0 %68
    %v70 = vmul.f32 %v69, 0.001953125
    %v71 = vmul.f32 %v52, %v52
    %v72 = vmul.f32 %v53, %v53
    %v75 = vcombine.high %v71, %v71
    %v76 = vcombine.high %v72, %v72
    %v79 = vsel %vm60, %v71, 0.0
    %v80 = vsel %vm60, %v75, 0.0
    %v81 = vadd.f32 %v79, %v80
    %v82 = vsel %vm60, %v72, 0.0
    %v83 = vadd.f32 %v81, %v82
    %v84 = vsel %vm60, %v76, 0.0
    %v85 = vadd.f32 %v83, %v84
    %86 = vadd.xlane.f32.xlu0 %v85
    %v87 = vpop.xlane.xlu0 %86
    %v88 = vmul.f32 %v87, 0.001953125
    %v89 = vmul.f32 %v70, %v70
    %v90 = vsub.f32 %v88, %v89
    %v91 = vmax.f32 %v90, 0.0
    %v92 = vadd.f32 %v91, 1e-05
    %v93 = vrsqrt.pop %v92
    %v94 = vld [vmem:[#allocation5] sm:$0xf]
    %v95 = vmul.f32 %v93, %v94
    %v96 = vld [vmem:[#allocation7] sm:$0xf]
    %v97 = vmul.f32 %v70, %v95
    %v98 = vsub.f32 %v96, %v97
    %100 = vset.pattern.permute.xlu0 0
    %101 = vperm.xlu0 %100, %v95
    %v102 = vpop.permute.xlu0 %101
    %v104 = vunpack.c.l.s4 839922192
    %v105 = vunpack.c.0.s8 %v104
    %v106 = vlaneseq
    %v107 = vshrl.u32 %v106, 7
    %v108 = vsub.s32 %v105, %v107
    %v109 = vrot.slane %v102, %v108
    %v111 = vmul.f32 %v52, %v109
    %v112 = vmul.f32 %v53, %v109
    %114 = vset.pattern.permute.xlu0 0
    %115 = vperm.xlu0 %114, %v98
    %v116 = vpop.permute.xlu0 %115
    %v118 = vunpack.c.l.s4 839922192
    %v119 = vunpack.c.0.s8 %v118
    %v120 = vlaneseq
    %v121 = vshrl.u32 %v120, 7
    %v122 = vsub.s32 %v119, %v121
    %v123 = vrot.slane %v116, %v122
    %v125 = vadd.f32 %v111, %v123
    %v126 = vadd.f32 %v112, %v123
    %127 = vst [vmem:[#allocation8] sm:$0xff] %v125
    %128 = vst [vmem:[#allocation8 + $0x8] sm:$0xff] %v126
    // Predicated region
    $region26: #{tpu_custom_call.1} parent=1 // pred_check
      _
    $region27: #{tpu_custom_call.1} parent=1 // pred_check_branch
      %130 = sbr.rel (0) target = $region29
    $region28: #{tpu_custom_call.1} parent=1 // pred_region
      %s132 = ssub.s32 256, 256
      %133 = vsyncadd [#allocation4], %s132
      %s134 = sshll.u32 [#allocation8], 4
      %s135 = int_to_ptr.vmem [resolvable:$true] %s134
      %140 = dma.vmem_to_hbm [thread:$0]  %s135, 256, %s3, [#allocation4], 128, 128, 8
    $region29: #{tpu_custom_call.1} parent=1 // pred_fallthru
      _
    // Predicated region
    $region30: #{tpu_custom_call.1} parent=1 // pred_check
      _
    $region31: #{tpu_custom_call.1} parent=1 // pred_check_branch
      %142 = sbr.rel (0) target = $region33
    $region32: #{tpu_custom_call.1} parent=1 // pred_region
      %143 = dma.done [#allocation4], 256
    $region33: #{tpu_custom_call.1} parent=1 // pred_fallthru
      _
    %144 = vsyncpa [#allocation3], 1
    %145 = vsyncpa [#allocation6], 1
    %146 = vsyncpa [#allocation4], 1

</llo_original>
